<compile_context>
chip_gen: v5e
topology: v5e:2x2
jax: 0.10.0
libtpu: 0.0.40
codegen_flags: <defaults>
</compile_context>

<pallas_src>
import functools
import math

import jax
import jax.numpy as jnp
from jax.experimental import pallas as pl
from jax.experimental.pallas import tpu as pltpu

_HALF_LOG_2PI = 0.5 * math.log(2.0 * math.pi)


def _round_up(x, m):
    return (x + m - 1) // m * m


def policy_kernel(obs_ref, w1_ref, b1_ref, w2_ref, b2_ref, w3_ref, b3_ref,
                  std_ref, logp_const_ref, eps_ref, action_ref, logp_ref):
    """One batch tile of the policy head.

    obs (tile_b, obs_dim) and eps (tile_b, A) tiles are pipelined over the batch grid;
    weights / biases / std / logp_const are VMEM-resident (constant index_map).
    """
    # ---- MLP hot path: 3 small matmuls on the MXU, f32 accumulation ----
    x = obs_ref[...].astype(w1_ref.dtype)        # any f32->bf16 cast happens in-kernel
    h1 = jnp.dot(x, w1_ref[...], preferred_element_type=jnp.float32) + b1_ref[...]
    h1 = jnp.maximum(h1, 0.0).astype(w2_ref.dtype)
    h2 = jnp.dot(h1, w2_ref[...], preferred_element_type=jnp.float32) + b2_ref[...]
    h2 = jnp.maximum(h2, 0.0).astype(w3_ref.dtype)
    mu = jnp.dot(h2, w3_ref[...], preferred_element_type=jnp.float32) + b3_ref[...]

    # ---- reparameterized sample: action = mu + std * eps (pure f32 epilogue) ----
    eps = eps_ref[...]                           # (tile_b, A) — narrow, no lane padding
    action_ref[...] = (mu + std_ref[...] * eps).astype(action_ref.dtype)

    # ---- log_prob: (action - mu) == std * eps => -eps^2/2 - log_std - log(2*pi)/2 ----
    # logp_const = -(log_std + 0.5*log(2*pi)), precomputed outside the kernel.
    logp_elem = logp_const_ref[...] - 0.5 * eps * eps       # (tile_b, A)
    logp_ref[...] = jnp.sum(logp_elem, axis=1, keepdims=True)   # (tile_b, 1)


@functools.partial(jax.jit, static_argnames=("tile_b", "param_dtype"))
def policy_forward(obs, params, eps, *, tile_b=1024, param_dtype=jnp.float32):
    """obs: (B, obs_dim) f32; eps: (B, action_dim) f32 standard-normal noise.

    Returns (action (B, action_dim) f32, log_prob (B,) f32), matching the torch
    module's forward() (sampling via the reparameterization trick with external eps).
    """
    # TODO(synk): eps could be generated in-kernel (pltpu.prng_seed/prng_random_bits +
    # Box-Muller) to remove the eps DMA entirely; kept external for exact reference checks.
    w1, b1, w2, b2, w3, b3, log_std = params
    B, obs_dim = obs.shape
    hidden = w1.shape[1]
    A = w3.shape[1]
    f32 = jnp.float32

    # ---- tile / grid selection: biggest tile that still gives >= 2 grid steps ----
    tile_b = max(8, _round_up(min(int(tile_b), _round_up(B, 8)), 8))
    if _round_up(B, tile_b) // tile_b < 2 and B >= 16:
        tile_b = _round_up(pl.cdiv(B, 2), 8)     # keep both v7x TensorCores busy
    B_pad = _round_up(B, tile_b)
    grid = (B_pad // tile_b,)

    obs = obs.astype(f32)
    eps = eps.astype(f32)
    if B_pad != B:                                # only pad when B is not a tile multiple
        obs = jnp.zeros((B_pad, obs_dim), f32).at[:B].set(obs)
        eps = jnp.zeros((B_pad, A), f32).at[:B].set(eps)

    # Tiny resident constants (exp hoisted out of the kernel); epilogue stays f32.
    std = jnp.exp(log_std).astype(f32)                       # (1, A)
    logp_const = -(log_std.astype(f32) + _HALF_LOG_2PI)      # (1, A)

    # Weights in param_dtype (bf16 halves weight/obs vreg traffic, doubles MXU rate on
    # v6e/v7x); biases and the whole epilogue stay f32.
    w1_c = w1.astype(param_dtype)
    w2_c = w2.astype(param_dtype)
    w3_c = w3.astype(param_dtype)

    def resident(shape):    # VMEM-resident across all batch tiles (constant index_map)
        return pl.BlockSpec(shape, lambda i: (0, 0))

    action_p, logp_p = pl.pallas_call(
        policy_kernel,
        out_shape=(jax.ShapeDtypeStruct((B_pad, A), f32),
                   jax.ShapeDtypeStruct((B_pad, 1), f32)),
        grid=grid,
        in_specs=[
            pl.BlockSpec((tile_b, obs_dim), lambda i: (i, 0)),   # obs tile (pipelined)
            resident((obs_dim, hidden)),                         # w1
            resident((1, hidden)),                               # b1
            resident((hidden, hidden)),                          # w2
            resident((1, hidden)),                               # b2
            resident((hidden, A)),                               # w3
            resident((1, A)),                                    # b3
            resident((1, A)),                                    # std = exp(log_std)
            resident((1, A)),                                    # -(log_std + log(2pi)/2)
            pl.BlockSpec((tile_b, A), lambda i: (i, 0)),         # eps tile (pipelined)
        ],
        out_specs=(pl.BlockSpec((tile_b, A), lambda i: (i, 0)),
                   pl.BlockSpec((tile_b, 1), lambda i: (i, 0))),
        compiler_params=pltpu.CompilerParams(
            dimension_semantics=("parallel",)),   # batch tiles shard across v7x's 2 TCs
    )(obs, w1_c, b1.astype(f32), w2_c, b2.astype(f32), w3_c, b3.astype(f32),
      std, logp_const, eps)

    if B_pad != B:
        action_p = action_p[:B]
        logp_p = logp_p[:B]
    return action_p, logp_p[:, 0]


def init_params(key, obs_dim, hidden, action_dim):
    """Deterministic init mimicking nn.Linear default (uniform +/- 1/sqrt(fan_in))."""
    def linear(key, fan_in, fan_out):
        kw, kb = jax.random.split(key)
        bound = 1.0 / jnp.sqrt(fan_in)
        w = jax.random.uniform(kw, (fan_in, fan_out), jnp.float32, -bound, bound)
        b = jax.random.uniform(kb, (1, fan_out), jnp.float32, -bound, bound)
        return w, b

    k1, k2, k3 = jax.random.split(key, 3)
    w1, b1 = linear(k1, obs_dim, hidden)
    w2, b2 = linear(k2, hidden, hidden)
    w3, b3 = linear(k3, hidden, action_dim)
    log_std = jnp.zeros((1, action_dim), jnp.float32)   # nn.Parameter(torch.zeros(action_dim))
    return (w1, b1, w2, b2, w3, b3, log_std)


def _reference(obs, params, eps):
    w1, b1, w2, b2, w3, b3, log_std = params
    h1 = jnp.maximum(obs @ w1 + b1, 0.0)
    h2 = jnp.maximum(h1 @ w2 + b2, 0.0)
    mu = h2 @ w3 + b3
    std = jnp.exp(log_std)
    action = mu + std * eps
    logp = jnp.sum(-((action - mu) ** 2) / (2.0 * std * std)
                   - log_std - 0.5 * jnp.log(2.0 * jnp.pi), axis=1)
    return action, logp


if __name__ == "__main__":
    # args.encoder_num_hidden (obs dim), args.policy_num_hidden, args.action_dim
    B, OBS_DIM, HIDDEN, ACTION_DIM = 2, 32, 32, 8

    key = jax.random.PRNGKey(0)
    k_obs, k_params, k_eps = jax.random.split(key, 3)

    obs = jax.random.normal(k_obs, (B, OBS_DIM), jnp.float32)
    params = init_params(k_params, OBS_DIM, HIDDEN, ACTION_DIM)
    # Normal(mu, std).sample() == mu + std * eps, eps ~ N(0, 1) generated outside the kernel.
    eps = jax.random.normal(k_eps, (B, ACTION_DIM), jnp.float32)

    # ---- f32 path: strict check against the pure-JAX reference ----
    action, log_prob = policy_forward(obs, params, eps, param_dtype=jnp.float32)
    jax.block_until_ready((action, log_prob))
    action_ref, logp_ref = _reference(obs, params, eps)
    assert action.shape == (B, ACTION_DIM) and log_prob.shape == (B,)
    assert jnp.allclose(action, action_ref, atol=1e-5)
    assert jnp.allclose(log_prob, logp_ref, atol=1e-5)

    # ---- bf16 MXU path (v6e/v7x fast path): looser tolerance on mu-dependent outputs ----
    action_bf, log_prob_bf = policy_forward(obs, params, eps, param_dtype=jnp.bfloat16)
    jax.block_until_ready((action_bf, log_prob_bf))
    assert jnp.allclose(action_bf, action_ref, atol=5e-2, rtol=5e-2)
    assert jnp.allclose(log_prob_bf, logp_ref, atol=1e-4, rtol=1e-4)

    # ---- larger batch: exercises the multi-tile pipelined batch grid (grid >= 2) ----
    B_BIG = 1024
    kb_obs, kb_eps = jax.random.split(jax.random.PRNGKey(1))
    obs_big = jax.random.normal(kb_obs, (B_BIG, OBS_DIM), jnp.float32)
    eps_big = jax.random.normal(kb_eps, (B_BIG, ACTION_DIM), jnp.float32)
    a_big, lp_big = policy_forward(obs_big, params, eps_big, param_dtype=jnp.float32)
    jax.block_until_ready((a_big, lp_big))
    a_big_ref, lp_big_ref = _reference(obs_big, params, eps_big)
    assert jnp.allclose(a_big, a_big_ref, atol=1e-4)
    assert jnp.allclose(lp_big, lp_big_ref, atol=1e-4)

    # ---- ragged batch: exercises the batch-padding path ----
    B_RAG = 100
    kr_obs, kr_eps = jax.random.split(jax.random.PRNGKey(2))
    obs_rag = jax.random.normal(kr_obs, (B_RAG, OBS_DIM), jnp.float32)
    eps_rag = jax.random.normal(kr_eps, (B_RAG, ACTION_DIM), jnp.float32)
    a_rag, lp_rag = policy_forward(obs_rag, params, eps_rag, param_dtype=jnp.float32)
    jax.block_until_ready((a_rag, lp_rag))
    a_rag_ref, lp_rag_ref = _reference(obs_rag, params, eps_rag)
    assert a_rag.shape == (B_RAG, ACTION_DIM) and lp_rag.shape == (B_RAG,)
    assert jnp.allclose(a_rag, a_rag_ref, atol=1e-4)
    assert jnp.allclose(lp_rag, lp_rag_ref, atol=1e-4)

    print("KERNEL_OK")
</pallas_src>

<mosaic_0001>
module attributes {stable_mosaic.version = 11 : i64} {
  func.func @policy_kernel(%arg0: i32, %arg1: memref<8x32xf32, #tpu.memory_space<vmem>>, %arg2: memref<32x32xf32, #tpu.memory_space<vmem>>, %arg3: memref<1x32xf32, #tpu.memory_space<vmem>>, %arg4: memref<32x32xf32, #tpu.memory_space<vmem>>, %arg5: memref<1x32xf32, #tpu.memory_space<vmem>>, %arg6: memref<32x8xf32, #tpu.memory_space<vmem>>, %arg7: memref<1x8xf32, #tpu.memory_space<vmem>>, %arg8: memref<1x8xf32, #tpu.memory_space<vmem>>, %arg9: memref<1x8xf32, #tpu.memory_space<vmem>>, %arg10: memref<8x8xf32, #tpu.memory_space<vmem>>, %arg11: memref<8x8xf32, #tpu.memory_space<vmem>>, %arg12: memref<8x1xf32, #tpu.memory_space<vmem>>) attributes {dimension_semantics = [#tpu.dimension_semantics<parallel>], iteration_bounds = array<i64: 1>, scalar_prefetch = 0 : i64, scratch_operands = 0 : i64, tpu.core_type = #tpu.core_type<tc>, window_params = [{transform_indices = @transform_0, window_bounds = array<i64: 8, 32>}, {pipeline_mode = #tpu.pipeline_mode<synchronous>, transform_indices = @transform_1, window_bounds = array<i64: 32, 32>}, {pipeline_mode = #tpu.pipeline_mode<synchronous>, transform_indices = @transform_2, window_bounds = array<i64: 1, 32>}, {pipeline_mode = #tpu.pipeline_mode<synchronous>, transform_indices = @transform_3, window_bounds = array<i64: 32, 32>}, {pipeline_mode = #tpu.pipeline_mode<synchronous>, transform_indices = @transform_4, window_bounds = array<i64: 1, 32>}, {pipeline_mode = #tpu.pipeline_mode<synchronous>, transform_indices = @transform_5, window_bounds = array<i64: 32, 8>}, {pipeline_mode = #tpu.pipeline_mode<synchronous>, transform_indices = @transform_6, window_bounds = array<i64: 1, 8>}, {pipeline_mode = #tpu.pipeline_mode<synchronous>, transform_indices = @transform_7, window_bounds = array<i64: 1, 8>}, {pipeline_mode = #tpu.pipeline_mode<synchronous>, transform_indices = @transform_8, window_bounds = array<i64: 1, 8>}, {transform_indices = @transform_9, window_bounds = array<i64: 8, 8>}, {transform_indices = @transform_10, window_bounds = array<i64: 8, 8>}, {transform_indices = @transform_11, window_bounds = array<i64: 8, 1>}]} {
    %c0 = arith.constant 0 : index
    %c0_0 = arith.constant 0 : index
    %0 = vector.load %arg1[%c0, %c0_0] : memref<8x32xf32, #tpu.memory_space<vmem>>, vector<8x32xf32>
    %c0_1 = arith.constant 0 : index
    %c0_2 = arith.constant 0 : index
    %1 = vector.load %arg2[%c0_1, %c0_2] : memref<32x32xf32, #tpu.memory_space<vmem>>, vector<32x32xf32>
    %cst = arith.constant dense<0.000000e+00> : vector<8x32xf32>
    %2 = tpu.matmul %0, %1, %cst {dimension_numbers = #tpu.dot_dimension_numbers<[1], [0], [0], [1], [0, 0, 1, 1], [], []>} : vector<8x32xf32>, vector<32x32xf32>, vector<8x32xf32> -> vector<8x32xf32>
    %c0_3 = arith.constant 0 : index
    %c0_4 = arith.constant 0 : index
    %3 = vector.load %arg3[%c0_3, %c0_4] : memref<1x32xf32, #tpu.memory_space<vmem>>, vector<1x32xf32>
    %4 = vector.broadcast %3 : vector<1x32xf32> to vector<8x32xf32>
    %5 = arith.addf %2, %4 : vector<8x32xf32>
    %cst_5 = arith.constant 0.000000e+00 : f32
    %6 = vector.broadcast %cst_5 : f32 to vector<8x32xf32>
    %7 = arith.maximumf %5, %6 : vector<8x32xf32>
    %c0_6 = arith.constant 0 : index
    %c0_7 = arith.constant 0 : index
    %8 = vector.load %arg4[%c0_6, %c0_7] : memref<32x32xf32, #tpu.memory_space<vmem>>, vector<32x32xf32>
    %cst_8 = arith.constant dense<0.000000e+00> : vector<8x32xf32>
    %9 = tpu.matmul %7, %8, %cst_8 {dimension_numbers = #tpu.dot_dimension_numbers<[1], [0], [0], [1], [0, 0, 1, 1], [], []>} : vector<8x32xf32>, vector<32x32xf32>, vector<8x32xf32> -> vector<8x32xf32>
    %c0_9 = arith.constant 0 : index
    %c0_10 = arith.constant 0 : index
    %10 = vector.load %arg5[%c0_9, %c0_10] : memref<1x32xf32, #tpu.memory_space<vmem>>, vector<1x32xf32>
    %11 = vector.broadcast %10 : vector<1x32xf32> to vector<8x32xf32>
    %12 = arith.addf %9, %11 : vector<8x32xf32>
    %cst_11 = arith.constant 0.000000e+00 : f32
    %13 = vector.broadcast %cst_11 : f32 to vector<8x32xf32>
    %14 = arith.maximumf %12, %13 : vector<8x32xf32>
    %c0_12 = arith.constant 0 : index
    %c0_13 = arith.constant 0 : index
    %15 = vector.load %arg6[%c0_12, %c0_13] : memref<32x8xf32, #tpu.memory_space<vmem>>, vector<32x8xf32>
    %cst_14 = arith.constant dense<0.000000e+00> : vector<8x8xf32>
    %16 = tpu.matmul %14, %15, %cst_14 {dimension_numbers = #tpu.dot_dimension_numbers<[1], [0], [0], [1], [0, 0, 1, 1], [], []>} : vector<8x32xf32>, vector<32x8xf32>, vector<8x8xf32> -> vector<8x8xf32>
    %c0_15 = arith.constant 0 : index
    %c0_16 = arith.constant 0 : index
    %17 = vector.load %arg7[%c0_15, %c0_16] : memref<1x8xf32, #tpu.memory_space<vmem>>, vector<1x8xf32>
    %18 = vector.broadcast %17 : vector<1x8xf32> to vector<8x8xf32>
    %19 = arith.addf %16, %18 : vector<8x8xf32>
    %c0_17 = arith.constant 0 : index
    %c0_18 = arith.constant 0 : index
    %20 = vector.load %arg10[%c0_17, %c0_18] : memref<8x8xf32, #tpu.memory_space<vmem>>, vector<8x8xf32>
    %c0_19 = arith.constant 0 : index
    %c0_20 = arith.constant 0 : index
    %21 = vector.load %arg8[%c0_19, %c0_20] : memref<1x8xf32, #tpu.memory_space<vmem>>, vector<1x8xf32>
    %22 = vector.broadcast %21 : vector<1x8xf32> to vector<8x8xf32>
    %23 = arith.mulf %22, %20 : vector<8x8xf32>
    %24 = arith.addf %19, %23 : vector<8x8xf32>
    %c0_21 = arith.constant 0 : index
    %c0_22 = arith.constant 0 : index
    %25 = vector.load %arg11[%c0_21, %c0_22] : memref<8x8xf32, #tpu.memory_space<vmem>>, vector<8x8xf32>
    tpu.vector_store %arg11[%c0_21, %c0_22], %24 {strides = array<i32>} : memref<8x8xf32, #tpu.memory_space<vmem>>, vector<8x8xf32>,
    %c0_23 = arith.constant 0 : index
    %c0_24 = arith.constant 0 : index
    %26 = vector.load %arg9[%c0_23, %c0_24] : memref<1x8xf32, #tpu.memory_space<vmem>>, vector<1x8xf32>
    %cst_25 = arith.constant 5.000000e-01 : f32
    %27 = vector.broadcast %cst_25 : f32 to vector<8x8xf32>
    %28 = arith.mulf %27, %20 : vector<8x8xf32>
    %29 = arith.mulf %28, %20 : vector<8x8xf32>
    %30 = vector.broadcast %26 : vector<1x8xf32> to vector<8x8xf32>
    %31 = arith.subf %30, %29 : vector<8x8xf32>
    %cst_26 = arith.constant dense<0.000000e+00> : vector<8xf32>
    %32 = vector.multi_reduction <add>, %31, %cst_26 [1] : vector<8x8xf32> to vector<8xf32>
    %33 = vector.shape_cast %32 : vector<8xf32> to vector<8x1xf32>
    %c0_27 = arith.constant 0 : index
    %c0_28 = arith.constant 0 : index
    %34 = vector.load %arg12[%c0_27, %c0_28] : memref<8x1xf32, #tpu.memory_space<vmem>>, vector<8x1xf32>
    tpu.vector_store %arg12[%c0_27, %c0_28], %33 {strides = array<i32>} : memref<8x1xf32, #tpu.memory_space<vmem>>, vector<8x1xf32>,
    return
  }
  func.func @transform_0(%arg0: i32) -> (i32, i32) {
    %c0_i32 = arith.constant 0 : i32
    %c0_i32_0 = arith.constant 0 : i32
    return %arg0, %c0_i32 : i32, i32
  }
  func.func @transform_1(%arg0: i32) -> (i32, i32) {
    %c0_i32 = arith.constant 0 : i32
    %c0_i32_0 = arith.constant 0 : i32
    %c0_i32_1 = arith.constant 0 : i32
    return %c0_i32, %c0_i32_0 : i32, i32
  }
  func.func @transform_2(%arg0: i32) -> (i32, i32) {
    %c0_i32 = arith.constant 0 : i32
    %c0_i32_0 = arith.constant 0 : i32
    %c0_i32_1 = arith.constant 0 : i32
    return %c0_i32, %c0_i32_0 : i32, i32
  }
  func.func @transform_3(%arg0: i32) -> (i32, i32) {
    %c0_i32 = arith.constant 0 : i32
    %c0_i32_0 = arith.constant 0 : i32
    %c0_i32_1 = arith.constant 0 : i32
    return %c0_i32, %c0_i32_0 : i32, i32
  }
  func.func @transform_4(%arg0: i32) -> (i32, i32) {
    %c0_i32 = arith.constant 0 : i32
    %c0_i32_0 = arith.constant 0 : i32
    %c0_i32_1 = arith.constant 0 : i32
    return %c0_i32, %c0_i32_0 : i32, i32
  }
  func.func @transform_5(%arg0: i32) -> (i32, i32) {
    %c0_i32 = arith.constant 0 : i32
    %c0_i32_0 = arith.constant 0 : i32
    %c0_i32_1 = arith.constant 0 : i32
    return %c0_i32, %c0_i32_0 : i32, i32
  }
  func.func @transform_6(%arg0: i32) -> (i32, i32) {
    %c0_i32 = arith.constant 0 : i32
    %c0_i32_0 = arith.constant 0 : i32
    %c0_i32_1 = arith.constant 0 : i32
    return %c0_i32, %c0_i32_0 : i32, i32
  }
  func.func @transform_7(%arg0: i32) -> (i32, i32) {
    %c0_i32 = arith.constant 0 : i32
    %c0_i32_0 = arith.constant 0 : i32
    %c0_i32_1 = arith.constant 0 : i32
    return %c0_i32, %c0_i32_0 : i32, i32
  }
  func.func @transform_8(%arg0: i32) -> (i32, i32) {
    %c0_i32 = arith.constant 0 : i32
    %c0_i32_0 = arith.constant 0 : i32
    %c0_i32_1 = arith.constant 0 : i32
    return %c0_i32, %c0_i32_0 : i32, i32
  }
  func.func @transform_9(%arg0: i32) -> (i32, i32) {
    %c0_i32 = arith.constant 0 : i32
    %c0_i32_0 = arith.constant 0 : i32
    return %arg0, %c0_i32 : i32, i32
  }
  func.func @transform_10(%arg0: i32) -> (i32, i32) {
    %c0_i32 = arith.constant 0 : i32
    %c0_i32_0 = arith.constant 0 : i32
    return %arg0, %c0_i32 : i32, i32
  }
  func.func @transform_11(%arg0: i32) -> (i32, i32) {
    %c0_i32 = arith.constant 0 : i32
    %c0_i32_0 = arith.constant 0 : i32
    return %arg0, %c0_i32 : i32, i32
  }
}

</mosaic_0001>

<llo_original>
// kernel: policy_forward.1
$region0: #{policy_forward.1}
  #allocation0 [shape = 'u32[]', space=smem, size = 0x4, offset = 0x4, fixed_abs, tag = 'smem constant byte address 0x4 - core index']
  #allocation1 [shape = 'u32[72,128]{1,0:T(1,128)}', space=vmem, size = 0x9000, scoped, tag = 'internal scratch']
  %s0 = inlined_call_operand.vmem [shape: f32[8,32], index: 0, kind: input, shape index: {}]
  %s1 = inlined_call_operand.vmem [shape: f32[32,32], index: 1, kind: input, shape index: {}]
  %s2 = inlined_call_operand.vmem [shape: f32[1,32], index: 2, kind: input, shape index: {}]
  %s3 = inlined_call_operand.hbm [shape: f32[32,32], index: 3, kind: input, shape index: {}]
  %s4 = inlined_call_operand.vmem [shape: f32[1,32], index: 4, kind: input, shape index: {}]
  %s5 = inlined_call_operand.vmem [shape: f32[32,8], index: 5, kind: input, shape index: {}]
  %s6 = inlined_call_operand.vmem [shape: f32[1,8], index: 6, kind: input, shape index: {}]
  %s7 = inlined_call_operand.vmem [shape: f32[1,8], index: 7, kind: input, shape index: {}]
  %s8 = inlined_call_operand.vmem [shape: f32[1,8], index: 8, kind: input, shape index: {}]
  %s9 = inlined_call_operand.vmem [shape: f32[8,8], index: 9, kind: input, shape index: {}]
  %s10 = inlined_call_operand.vmem [shape: f32[8,8], index: 10, kind: output, shape index: {0}]
  %s11 = inlined_call_operand.vmem [shape: f32[8,1], index: 11, kind: output, shape index: {1}]
  %12 = xla_tuple %s10, %s11
  %s13 = sld [smem:[#allocation0]]
  $region62: #{policy_forward.1} parent=0
    _
  %s15 = ssub.s32 1, %s13
  %s16 = scalar_select 0, %s15, %s13
  $region1: #{policy_forward.1} parent=0
    #allocation2 [shape = 'u8[16384]{0}', space=vmem, size = 0x4000, scoped, tag = 'input window, operand 3, single buffered']
    #allocation3 [shape = 's32[1]{0}', space=sflag, size = 0x4, scoped, tag = 'scoped memory for policy_forward.1']
    %17 = vsyncpa [#allocation3], 0
    // Predicated region
    $region2: #{policy_forward.1} parent=1 // pred_check
      _
    $region3: #{policy_forward.1} parent=1 // pred_check_branch
      %19 = sbr.rel (0) target = $region5
    $region4: #{policy_forward.1} parent=1 // pred_region
      _
    $region5: #{policy_forward.1} parent=1 // pred_fallthru
      _
    // Predicated region
    $region6: #{policy_forward.1} parent=1 // pred_check
      _
    $region7: #{policy_forward.1} parent=1 // pred_check_branch
      %21 = sbr.rel (0) target = $region9
    $region8: #{policy_forward.1} parent=1 // pred_region
      _
    $region9: #{policy_forward.1} parent=1 // pred_fallthru
      _
    // Predicated region
    $region10: #{policy_forward.1} parent=1 // pred_check
      _
    $region11: #{policy_forward.1} parent=1 // pred_check_branch
      %23 = sbr.rel (0) target = $region13
    $region12: #{policy_forward.1} parent=1 // pred_region
      _
    $region13: #{policy_forward.1} parent=1 // pred_fallthru
      _
    // Predicated region
    $region14: #{policy_forward.1} parent=1 // pred_check
      _
    $region15: #{policy_forward.1} parent=1 // pred_check_branch
      %25 = sbr.rel (0) target = $region17
    $region16: #{policy_forward.1} parent=1 // pred_region
      %27 = vsyncadd [#allocation3], 0
      %s28 = sshll.u32 %s3, 4
      %s29 = int_to_ptr.hbm [resolvable:$true] %s28
      %s30 = sshll.u32 [#allocation2], 4
      %s31 = int_to_ptr.vmem [resolvable:$true] %s30
      %36 = dma.hbm_to_vmem [thread:$0]  %s29, 512, %s31, [#allocation3], 128, 128, 8
    $region17: #{policy_forward.1} parent=1 // pred_fallthru
      _
    // Predicated region
    $region18: #{policy_forward.1} parent=1 // pred_check
      _
    $region19: #{policy_forward.1} parent=1 // pred_check_branch
      %38 = sbr.rel (0) target = $region21
    $region20: #{policy_forward.1} parent=1 // pred_region
      _
    $region21: #{policy_forward.1} parent=1 // pred_fallthru
      _
    // Predicated region
    $region22: #{policy_forward.1} parent=1 // pred_check
      _
    $region23: #{policy_forward.1} parent=1 // pred_check_branch
      %40 = sbr.rel (0) target = $region25
    $region24: #{policy_forward.1} parent=1 // pred_region
      _
    $region25: #{policy_forward.1} parent=1 // pred_fallthru
      _
    // Predicated region
    $region26: #{policy_forward.1} parent=1 // pred_check
      _
    $region27: #{policy_forward.1} parent=1 // pred_check_branch
      %42 = sbr.rel (0) target = $region29
    $region28: #{policy_forward.1} parent=1 // pred_region
      _
    $region29: #{policy_forward.1} parent=1 // pred_fallthru
      _
    // Predicated region
    $region30: #{policy_forward.1} parent=1 // pred_check
      _
    $region31: #{policy_forward.1} parent=1 // pred_check_branch
      %44 = sbr.rel (0) target = $region33
    $region32: #{policy_forward.1} parent=1 // pred_region
      _
    $region33: #{policy_forward.1} parent=1 // pred_fallthru
      _
    // Predicated region
    $region34: #{policy_forward.1} parent=1 // pred_check
      _
    $region35: #{policy_forward.1} parent=1 // pred_check_branch
      %46 = sbr.rel (0) target = $region37
    $region36: #{policy_forward.1} parent=1 // pred_region
      _
    $region37: #{policy_forward.1} parent=1 // pred_fallthru
      _
    // Predicated region
    $region38: #{policy_forward.1} parent=1 // pred_check
      _
    $region39: #{policy_forward.1} parent=1 // pred_check_branch
      %48 = sbr.rel (0) target = $region41
    $region40: #{policy_forward.1} parent=1 // pred_region
      _
    $region41: #{policy_forward.1} parent=1 // pred_fallthru
      _
    // Predicated region
    $region42: #{policy_forward.1} parent=1 // pred_check
      _
    $region43: #{policy_forward.1} parent=1 // pred_check_branch
      %50 = sbr.rel (0) target = $region45
    $region44: #{policy_forward.1} parent=1 // pred_region
      %52 = dma.done [#allocation3], 512
    $region45: #{policy_forward.1} parent=1 // pred_fallthru
      _
    %v53 = vld [vmem:[%s0] sm:$0xff]
    %v54 = vld [vmem:[%s1] sm:$0xff]
    %v55 = vld [vmem:[%s1 + $0x8] sm:$0xff]
    %v56 = vld [vmem:[%s1 + $0x10] sm:$0xff]
    %v57 = vld [vmem:[%s1 + $0x18] sm:$0xff]
    %v58 = vld [vmem:[%s2] sm:$0x1]
    %v60 = vperm.slane %v58, 0
    %vm62 = vcmask 261120
    %v64 = vsel %vm62, %v53, 0
    %66 = vmatpush.msra.mxu0 0.0
    %67 = vmatpush.msra.mxu0 0.0
    %68 = vmatpush.msra.mxu0 0.0
    %69 = vmatpush.msra.mxu0 0.0
    %70 = vmatpush.msra.mxu0 0.0
    %71 = vmatpush.msra.mxu0 0.0
    %72 = vmatpush.msra.mxu0 0.0
    %73 = vmatpush.msra.mxu0 0.0
    %74 = vmatpush.msra.mxu0 0.0
    %75 = vmatpush.msra.mxu0 0.0
    %76 = vmatpush.msra.mxu0 0.0
    %77 = vmatpush.msra.mxu0 0.0
    %78 = vmatpush.msra.mxu0 %v57
    %79 = vmatpush.msra.mxu0 %v56
    %80 = vmatpush.msra.mxu0 %v55
    %81 = vmatpush.msra.mxu0 %v54
    %82 = vmatmul.f32.gmra.mxu0 %v64
    %v83 = vpop.f32.mrf.mxu0
    %v84 = vadd.f32 %v60, %v83
    %85 = vdwg.mxu0
    %v86 = vmax.f32 %v84, 0.0
    %v87 = vld [vmem:[#allocation2] sm:$0xff]
    %v88 = vld [vmem:[#allocation2 + $0x8] sm:$0xff]
    %v89 = vld [vmem:[#allocation2 + $0x10] sm:$0xff]
    %v90 = vld [vmem:[#allocation2 + $0x18] sm:$0xff]
    %v91 = vld [vmem:[%s4] sm:$0x1]
    %v93 = vperm.slane %v91, 0
    %v96 = vsel %vm62, %v86, 0
    %98 = vmatpush.msra.mxu0 0.0
    %99 = vmatpush.msra.mxu0 0.0
    %100 = vmatpush.msra.mxu0 0.0
    %101 = vmatpush.msra.mxu0 0.0
    %102 = vmatpush.msra.mxu0 0.0
    %103 = vmatpush.msra.mxu0 0.0
    %104 = vmatpush.msra.mxu0 0.0
    %105 = vmatpush.msra.mxu0 0.0
    %106 = vmatpush.msra.mxu0 0.0
    %107 = vmatpush.msra.mxu0 0.0
    %108 = vmatpush.msra.mxu0 0.0
    %109 = vmatpush.msra.mxu0 0.0
    %110 = vmatpush.msra.mxu0 %v90
    %111 = vmatpush.msra.mxu0 %v89
    %112 = vmatpush.msra.mxu0 %v88
    %113 = vmatpush.msra.mxu0 %v87
    %114 = vmatmul.f32.gmra.mxu0 %v96
    %v115 = vpop.f32.mrf.mxu0
    %v116 = vadd.f32 %v93, %v115
    %117 = vdwg.mxu0
    %v118 = vmax.f32 %v116, 0.0
    %v119 = vld [vmem:[%s5] sm:$0xff]
    %v120 = vld [vmem:[%s5 + $0x8] sm:$0xff]
    %v121 = vld [vmem:[%s5 + $0x10] sm:$0xff]
    %v122 = vld [vmem:[%s5 + $0x18] sm:$0xff]
    %v123 = vld [vmem:[%s6] sm:$0x1]
    %v125 = vperm.slane %v123, 0
    %v128 = vsel %vm62, %v118, 0
    %130 = vmatpush.msra.mxu0 0.0
    %131 = vmatpush.msra.mxu0 0.0
    %132 = vmatpush.msra.mxu0 0.0
    %133 = vmatpush.msra.mxu0 0.0
    %134 = vmatpush.msra.mxu0 0.0
    %135 = vmatpush.msra.mxu0 0.0
    %136 = vmatpush.msra.mxu0 0.0
    %137 = vmatpush.msra.mxu0 0.0
    %138 = vmatpush.msra.mxu0 0.0
    %139 = vmatpush.msra.mxu0 0.0
    %140 = vmatpush.msra.mxu0 0.0
    %141 = vmatpush.msra.mxu0 0.0
    %142 = vmatpush.msra.mxu0 %v122
    %143 = vmatpush.msra.mxu0 %v121
    %144 = vmatpush.msra.mxu0 %v120
    %145 = vmatpush.msra.mxu0 %v119
    %146 = vmatmul.f32.gmra.mxu0 %v128
    %v147 = vpop.f32.mrf.mxu0
    %v148 = vadd.f32 %v125, %v147
    %149 = vdwg.mxu0
    %v150 = vld [vmem:[%s9] sm:$0xff]
    %v151 = vld [vmem:[%s7] sm:$0x1]
    %v153 = vperm.slane %v151, 0
    %v155 = vmul.f32 %v153, %v150
    %v156 = vadd.f32 %v148, %v155
    %vm157 = vcmask 64512
    %158 = vst.msk [vmem:[%s10] sm:$0xff] %vm157, %v156
    %v159 = vld [vmem:[%s8] sm:$0x1]
    %v160 = vmul.f32 %v150, 0.5
    %v161 = vmul.f32 %v160, %v150
    %v163 = vperm.slane %v159, 0
    %v165 = vsub.f32 %v163, %v161
    %v166 = vsel %vm157, %v165, 0.0
    %167 = vadd.xlane.f32.xlu0 %v166
    %v168 = vpop.xlane.xlu0 %167
    %vm169 = vcmask 7168
    %170 = vst.msk [vmem:[%s11] sm:$0xff] %vm169, %v168
    // Predicated region
    $region46: #{policy_forward.1} parent=1 // pred_check
      _
    $region47: #{policy_forward.1} parent=1 // pred_check_branch
      %172 = sbr.rel (0) target = $region49
    $region48: #{policy_forward.1} parent=1 // pred_region
      _
    $region49: #{policy_forward.1} parent=1 // pred_fallthru
      _
    // Predicated region
    $region50: #{policy_forward.1} parent=1 // pred_check
      _
    $region51: #{policy_forward.1} parent=1 // pred_check_branch
      %174 = sbr.rel (0) target = $region53
    $region52: #{policy_forward.1} parent=1 // pred_region
      _
    $region53: #{policy_forward.1} parent=1 // pred_fallthru
      _
    // Predicated region
    $region54: #{policy_forward.1} parent=1 // pred_check
      _
    $region55: #{policy_forward.1} parent=1 // pred_check_branch
      %176 = sbr.rel (0) target = $region57
    $region56: #{policy_forward.1} parent=1 // pred_region
      _
    $region57: #{policy_forward.1} parent=1 // pred_fallthru
      _
    // Predicated region
    $region58: #{policy_forward.1} parent=1 // pred_check
      _
    $region59: #{policy_forward.1} parent=1 // pred_check_branch
      %178 = sbr.rel (0) target = $region61
    $region60: #{policy_forward.1} parent=1 // pred_region
      _
    $region61: #{policy_forward.1} parent=1 // pred_fallthru
      _
    %179 = vsyncpa [#allocation3], 1

</llo_original>
